<compile_context>
chip_gen: v5e
topology: v5e:2x2
jax: 0.10.0
libtpu: 0.0.40
codegen_flags: <defaults>
</compile_context>

<pallas_src>
import jax
import jax.numpy as jnp
from jax import lax
from jax.experimental import pallas as pl
from jax.experimental.pallas import tpu as pltpu

# Conv hyper-parameters (fixed by the module definition).
C_IN = 3
C_OUT = 64
KH = KW = 3
STRIDE = 2
PAD = 1
K = C_IN * KH * KW            # 27

TM_MAX = 8192                 # output-pixel tile width (lane dim), mult. of 128


def _conv_kernel(w_ref, b_ref, p_ref, o_ref):
    """out_tile = W @ patches^T + b  (channel-major => NCHW-ordered output).

    w_ref: (C_OUT, K)   bf16, resident (constant index_map)
    b_ref: (C_OUT, 1)   f32
    p_ref: (K, TM)      bf16, pixel tile of the transposed patch matrix
    o_ref: (C_OUT, TM)  f32
    """
    acc = jnp.dot(w_ref[...], p_ref[...], preferred_element_type=jnp.float32)
    o_ref[...] = acc + b_ref[...]


def conv2d_pallas(x_nchw, weight, bias, *, tm_max=TM_MAX):
    """Conv2d(3, 64, k=3, s=2, p=1) forward.

    x_nchw: (N, 3, H, W) float32
    weight: (64, 3, 3, 3) float32 (PyTorch OIHW)
    bias:   (64,) float32
    returns (N, 64, OH, OW) float32 (NCHW, matching PyTorch).
    """
    N, C, H, W = x_nchw.shape
    assert C == C_IN
    OH = (H + 2 * PAD - KH) // STRIDE + 1
    OW = (W + 2 * PAD - KW) // STRIDE + 1
    npix = OH * OW

    # ---- wrapper glue: zero-pad + im2col, producing the *transposed* patch
    # matrix (N, K, OH*OW) in bf16. Input stays NCHW (no layout transpose);
    # under jit the pad + strided gather + cast fuse into one XLA pass.
    x_pad = jnp.pad(x_nchw, ((0, 0), (0, 0), (PAD, PAD), (PAD, PAD)))
    taps = [
        x_pad[:, :, kh:kh + STRIDE * OH:STRIDE, kw:kw + STRIDE * OW:STRIDE]
        for kh in range(KH) for kw in range(KW)
    ]                                              # 9 x (N, C, OH, OW)
    # K ordered as (c, kh, kw) to match weight.reshape(C_OUT, K).
    patches_t = (jnp.stack(taps, axis=2)           # (N, C, 9, OH, OW)
                 .reshape(N, K, npix)
                 .astype(jnp.bfloat16))

    w_mat = weight.reshape(C_OUT, K).astype(jnp.bfloat16)     # (64, 27)
    b_mat = bias.reshape(C_OUT, 1).astype(jnp.float32)        # (64, 1)

    # Pixel-axis tile: multiple of 128 (lane-dense, unmasked stores) when the
    # pixel axis is large enough; otherwise the full axis (always legal).
    if npix >= 128:
        tm = min(tm_max, ((npix + 127) // 128) * 128)
    else:
        tm = npix
    n_tiles = pl.cdiv(npix, tm)    # ragged last tile masked by Pallas

    out_flat = pl.pallas_call(
        _conv_kernel,
        out_shape=jax.ShapeDtypeStruct((N, C_OUT, npix), jnp.float32),
        grid=(N, n_tiles),
        in_specs=[
            pl.BlockSpec((C_OUT, K), lambda n, t: (0, 0)),       # weight (resident)
            pl.BlockSpec((C_OUT, 1), lambda n, t: (0, 0)),       # bias   (resident)
            pl.BlockSpec((None, K, tm), lambda n, t: (n, 0, t)), # patches^T tile
        ],
        out_specs=pl.BlockSpec((None, C_OUT, tm), lambda n, t: (n, 0, t)),
        compiler_params=pltpu.CompilerParams(
            dimension_semantics=("parallel", "parallel"),
            vmem_limit_bytes=32 * 1024 * 1024,
        ),
    )(w_mat, b_mat, patches_t)

    # (N, 64, OH*OW) is already channel-major: a free reshape gives NCHW.
    return out_flat.reshape(N, C_OUT, OH, OW)


def _reference_conv(x_nchw, weight, bias):
    out = lax.conv_general_dilated(
        x_nchw, weight,
        window_strides=(STRIDE, STRIDE),
        padding=((PAD, PAD), (PAD, PAD)),
        dimension_numbers=("NCHW", "OIHW", "NCHW"),
    )
    return out + bias.reshape(1, C_OUT, 1, 1)


if __name__ == "__main__":
    key = jax.random.PRNGKey(0)
    k_x, k_w, k_b = jax.random.split(key, 3)

    # Small shapes consistent with the module: batch=2, C=3, 16x16 spatial.
    N, H, W = 2, 16, 16
    x = jax.random.normal(k_x, (N, C_IN, H, W), dtype=jnp.float32)

    fan_in = C_IN * KH * KW
    bound = 1.0 / (fan_in ** 0.5)
    weight = jax.random.uniform(
        k_w, (C_OUT, C_IN, KH, KW), dtype=jnp.float32, minval=-bound, maxval=bound
    )
    bias = jax.random.uniform(
        k_b, (C_OUT,), dtype=jnp.float32, minval=-bound, maxval=bound
    )

    conv_fn = jax.jit(conv2d_pallas)
    out = jax.block_until_ready(conv_fn(x, weight, bias))

    # Reference uses the same bf16 rounding of the matmul operands that the
    # kernel feeds to the MXU (f32 accumulation), so the check stays tight.
    x_q = x.astype(jnp.bfloat16).astype(jnp.float32)
    w_q = weight.astype(jnp.bfloat16).astype(jnp.float32)
    ref = _reference_conv(x_q, w_q, bias)

    assert out.shape == (N, C_OUT, H // 2, W // 2), out.shape
    err = float(jnp.max(jnp.abs(out - ref)))
    assert jnp.allclose(out, ref, atol=1e-2, rtol=1e-2), f"mismatch, max abs err={err}"

    print("KERNEL_OK")
</pallas_src>

<mosaic_0001>
module attributes {stable_mosaic.version = 11 : i64} {
  func.func @_conv_kernel(%arg0: i32, %arg1: i32, %arg2: memref<64x27xbf16, #tpu.memory_space<vmem>>, %arg3: memref<64x1xf32, #tpu.memory_space<vmem>>, %arg4: memref<1x27x64xbf16, #tpu.memory_space<vmem>>, %arg5: memref<1x64x64xf32, #tpu.memory_space<vmem>>) attributes {dimension_semantics = [#tpu.dimension_semantics<parallel>, #tpu.dimension_semantics<parallel>], iteration_bounds = array<i64: 2, 1>, scalar_prefetch = 0 : i64, scratch_operands = 0 : i64, tpu.core_type = #tpu.core_type<tc>, window_params = [{pipeline_mode = #tpu.pipeline_mode<synchronous>, transform_indices = @transform_0, window_bounds = array<i64: 64, 27>}, {pipeline_mode = #tpu.pipeline_mode<synchronous>, transform_indices = @transform_1, window_bounds = array<i64: 64, 1>}, {transform_indices = @transform_2, window_bounds = array<i64: 1, 27, 64>}, {transform_indices = @transform_3, window_bounds = array<i64: 1, 64, 64>}]} {
    %c0 = arith.constant 0 : index
    %c0_0 = arith.constant 0 : index
    %0 = vector.load %arg2[%c0, %c0_0] : memref<64x27xbf16, #tpu.memory_space<vmem>>, vector<64x27xbf16>
    %c0_1 = arith.constant 0 : index
    %c0_2 = arith.constant 0 : index
    %c0_3 = arith.constant 0 : index
    %1 = vector.load %arg4[%c0_1, %c0_2, %c0_3] : memref<1x27x64xbf16, #tpu.memory_space<vmem>>, vector<1x27x64xbf16>
    %2 = vector.shape_cast %1 : vector<1x27x64xbf16> to vector<27x64xbf16>
    %cst = arith.constant dense<0.000000e+00> : vector<64x64xf32>
    %3 = tpu.matmul %0, %2, %cst {dimension_numbers = #tpu.dot_dimension_numbers<[1], [0], [0], [1], [0, 0, 1, 1], [], []>} : vector<64x27xbf16>, vector<27x64xbf16>, vector<64x64xf32> -> vector<64x64xf32>
    %c0_4 = arith.constant 0 : index
    %c0_5 = arith.constant 0 : index
    %4 = vector.load %arg3[%c0_4, %c0_5] : memref<64x1xf32, #tpu.memory_space<vmem>>, vector<64x1xf32>
    %5 = vector.broadcast %4 : vector<64x1xf32> to vector<64x64xf32>
    %6 = arith.addf %3, %5 : vector<64x64xf32>
    %c0_6 = arith.constant 0 : index
    %c0_7 = arith.constant 0 : index
    %c0_8 = arith.constant 0 : index
    %7 = vector.load %arg5[%c0_6, %c0_7, %c0_8] : memref<1x64x64xf32, #tpu.memory_space<vmem>>, vector<1x64x64xf32>
    %8 = vector.shape_cast %7 : vector<1x64x64xf32> to vector<64x64xf32>
    %9 = vector.shape_cast %6 : vector<64x64xf32> to vector<1x64x64xf32>
    tpu.vector_store %arg5[%c0_6, %c0_7, %c0_8], %9 {strides = array<i32>} : memref<1x64x64xf32, #tpu.memory_space<vmem>>, vector<1x64x64xf32>,
    return
  }
  func.func @transform_0(%arg0: i32, %arg1: i32) -> (i32, i32) {
    %c0_i32 = arith.constant 0 : i32
    %c0_i32_0 = arith.constant 0 : i32
    %c0_i32_1 = arith.constant 0 : i32
    return %c0_i32, %c0_i32_0 : i32, i32
  }
  func.func @transform_1(%arg0: i32, %arg1: i32) -> (i32, i32) {
    %c0_i32 = arith.constant 0 : i32
    %c0_i32_0 = arith.constant 0 : i32
    %c0_i32_1 = arith.constant 0 : i32
    return %c0_i32, %c0_i32_0 : i32, i32
  }
  func.func @transform_2(%arg0: i32, %arg1: i32) -> (i32, i32, i32) {
    %c0_i32 = arith.constant 0 : i32
    %c0_i32_0 = arith.constant 0 : i32
    return %arg0, %c0_i32, %arg1 : i32, i32, i32
  }
  func.func @transform_3(%arg0: i32, %arg1: i32) -> (i32, i32, i32) {
    %c0_i32 = arith.constant 0 : i32
    %c0_i32_0 = arith.constant 0 : i32
    return %arg0, %c0_i32, %arg1 : i32, i32, i32
  }
}

</mosaic_0001>

<llo_original>
// kernel: conv2d_pallas.1
$region0: #{conv2d_pallas.1}
  #allocation0 [shape = 'u32[]', space=smem, size = 0x4, offset = 0x4, fixed_abs, tag = 'smem constant byte address 0x4 - core index']
  #allocation1 [shape = 'u32[72,128]{1,0:T(1,128)}', space=vmem, size = 0x9000, scoped, tag = 'internal scratch']
  %s0 = inlined_call_operand.vmem [shape: bf16[64,27], index: 0, kind: input, shape index: {}]
  %s1 = inlined_call_operand.vmem [shape: f32[64,1], index: 1, kind: input, shape index: {}]
  %s2 = inlined_call_operand.vmem [shape: bf16[2,27,64], index: 2, kind: input, shape index: {}]
  %s3 = inlined_call_operand.vmem [shape: f32[2,64,64], index: 3, kind: output, shape index: {}]
  %s4 = sld [smem:[#allocation0]]
  $region45: #{conv2d_pallas.1} parent=0
    _
  %s6 = ssub.s32 1, %s4
  %s7 = scalar_select 0, %s6, %s4
  loop: start=0, step=1, limit=4
  $region2: #{conv2d_pallas.1} parent=0 // loop_pre_header
    _
  $region3: #{conv2d_pallas.1} parent=0 // loop_header
    %s9 = sphi 0, %s13
    %p10 = scmp.ge.s32.totalorder %s9, 4
    %s16 = sphi 0, %s28
    %s17 = sphi 0, %s24
    %s18 = sphi 0, %s16
    %s19 = sphi 0, %s17
    %s20 = sphi 0, %s18
    %s21 = sphi 0, %s19
    %s29 = sphi 0, %s29
    %s31 = sphi 0, %s29
    %s32 = sphi 0, %s31
    %s46 = sphi 0, %s32
    %s50 = sphi 0, %s50
    %s52 = sphi 0, %s50
    %s53 = sphi 0, %s52
    %s67 = sphi 0, %s53
    %s75 = sphi 0, %s77
    %s78 = sphi 0, %s75
    %s79 = sphi 0, %s78
    %s95 = sphi 0, %s79
    %s103 = sphi 0, %s105
    %s106 = sphi 0, %s103
    %s107 = sphi 0, %s106
    %s123 = sphi 0, %s107
  $region4: #{conv2d_pallas.1} parent=0 // loop_header_branch
    %12 = sbr.rel (%p10) target = $region8
  $region5: #{conv2d_pallas.1} parent=0 // loop_body
    %s14 = ssub.s32 %s9, 1
    %s15 = ssub.s32 %s9, 2
    %s22 = sadd.s32 1, %s17
    %p23 = scmp.ge.s32.totalorder %s22, 1
    %s24 = scalar_select %p23, 0, %s22
    %s25 = sadd.s32 1, %s16
    %s26 = scalar_select %p23, %s25, %s16
    %p27 = scmp.ge.s32.totalorder %s26, 2
    %s28 = scalar_select %p27, 0, %s26
    %s30 = sadd.s32 %s29, 1
    %p33 = scmp.eq.s32.totalorder %s9, 1
    %p34 = scmp.ne.s32.totalorder %s29, %s31
    %p35 = scmp.eq.s32.totalorder %s9, 0
    %p36 = por %p34, %p35
    %p37 = scmp.ne.s32.totalorder %s29, %s31
    %p38 = scmp.eq.s32.totalorder %s14, 1
    %p39 = por %p37, %p38
    %p40 = scmp.ne.s32.totalorder %s31, %s32
    %p41 = scmp.eq.s32.totalorder %s14, 0
    %p42 = por %p40, %p41
    %p43 = scmp.ne.s32.totalorder %s31, %s32
    %p44 = scmp.eq.s32.totalorder %s15, 1
    %p45 = por %p43, %p44
    %p47 = scmp.ne.s32.totalorder %s32, %s46
    %p48 = scmp.eq.s32.totalorder %s15, 0
    %p49 = por %p47, %p48
    %s51 = sadd.s32 %s50, 1
    %p54 = scmp.eq.s32.totalorder %s9, 1
    %p55 = scmp.ne.s32.totalorder %s50, %s52
    %p56 = scmp.eq.s32.totalorder %s9, 0
    %p57 = por %p55, %p56
    %p58 = scmp.ne.s32.totalorder %s50, %s52
    %p59 = scmp.eq.s32.totalorder %s14, 1
    %p60 = por %p58, %p59
    %p61 = scmp.ne.s32.totalorder %s52, %s53
    %p62 = scmp.eq.s32.totalorder %s14, 0
    %p63 = por %p61, %p62
    %p64 = scmp.ne.s32.totalorder %s52, %s53
    %p65 = scmp.eq.s32.totalorder %s15, 1
    %p66 = por %p64, %p65
    %p68 = scmp.ne.s32.totalorder %s53, %s67
    %p69 = scmp.eq.s32.totalorder %s15, 0
    %p70 = por %p68, %p69
    %s71 = ssub.s32 %s16, %s28
    %s72 = ssub.s32 %s17, %s24
    %s73 = sor.u32 %s71, %s72
    %p74 = scmp.eq.s32.totalorder %s73, 0
    %s76 = sadd.s32 %s75, 1
    %s77 = scalar_select %p74, %s75, %s76
    %p80 = pneg %p74
    %p81 = scmp.eq.s32.totalorder %s9, 1
    %p82 = por %p80, %p81
    %p83 = scmp.ne.s32.totalorder %s75, %s78
    %p84 = scmp.eq.s32.totalorder %s9, 0
    %p85 = por %p83, %p84
    %p86 = scmp.ne.s32.totalorder %s75, %s78
    %p87 = scmp.eq.s32.totalorder %s14, 1
    %p88 = por %p86, %p87
    %p89 = scmp.ne.s32.totalorder %s78, %s79
    %p90 = scmp.eq.s32.totalorder %s14, 0
    %p91 = por %p89, %p90
    %p92 = scmp.ne.s32.totalorder %s78, %s79
    %p93 = scmp.eq.s32.totalorder %s15, 1
    %p94 = por %p92, %p93
    %p96 = scmp.ne.s32.totalorder %s79, %s95
    %p97 = scmp.eq.s32.totalorder %s15, 0
    %p98 = por %p96, %p97
    %s99 = ssub.s32 %s16, %s28
    %s100 = ssub.s32 %s17, %s24
    %s101 = sor.u32 %s99, %s100
    %p102 = scmp.eq.s32.totalorder %s101, 0
    %s104 = sadd.s32 %s103, 1
    %s105 = scalar_select %p102, %s103, %s104
    %p108 = pneg %p102
    %p109 = scmp.eq.s32.totalorder %s9, 1
    %p110 = por %p108, %p109
    %p111 = scmp.ne.s32.totalorder %s103, %s106
    %p112 = scmp.eq.s32.totalorder %s9, 0
    %p113 = por %p111, %p112
    %p114 = scmp.ne.s32.totalorder %s103, %s106
    %p115 = scmp.eq.s32.totalorder %s14, 1
    %p116 = por %p114, %p115
    %p117 = scmp.ne.s32.totalorder %s106, %s107
    %p118 = scmp.eq.s32.totalorder %s14, 0
    %p119 = por %p117, %p118
    %p120 = scmp.ne.s32.totalorder %s106, %s107
    %p121 = scmp.eq.s32.totalorder %s15, 1
    %p122 = por %p120, %p121
    %p124 = scmp.ne.s32.totalorder %s107, %s123
    %p125 = scmp.eq.s32.totalorder %s15, 0
    %p126 = por %p124, %p125
    %p127 = scmp.le.s32.totalorder 1, %s9
    %p128 = scmp.lt.s32.totalorder %s9, 3
    %p129 = pnand %p127, %p128
    %p130 = pneg %p129
    // Predicated region
    $region9: #{conv2d_pallas.1} parent=5 // pred_check
      _
    $region10: #{conv2d_pallas.1} parent=5 // pred_check_branch
      %132 = sbr.rel (%p129) target = $region12
    $region11: #{conv2d_pallas.1} parent=5 // pred_region
      %s133 = ssub.s32 %s9, 1
      // Predicated region
      $region13: #{conv2d_pallas.1} parent=11 // pred_check
        %p134 = pneg %p42
      $region14: #{conv2d_pallas.1} parent=11 // pred_check_branch
        %136 = sbr.rel (%p134) target = $region16
      $region15: #{conv2d_pallas.1} parent=11 // pred_region
        _
      $region16: #{conv2d_pallas.1} parent=11 // pred_fallthru
        _
      // Predicated region
      $region17: #{conv2d_pallas.1} parent=11 // pred_check
        %p137 = pneg %p63
      $region18: #{conv2d_pallas.1} parent=11 // pred_check_branch
        %139 = sbr.rel (%p137) target = $region20
      $region19: #{conv2d_pallas.1} parent=11 // pred_region
        _
      $region20: #{conv2d_pallas.1} parent=11 // pred_fallthru
        _
    $region12: #{conv2d_pallas.1} parent=5 // pred_fallthru
      _
    %p140 = scmp.lt.s32.totalorder %s9, 2
    // Predicated region
    $region21: #{conv2d_pallas.1} parent=5 // pred_check
      %p141 = pneg %p140
    $region22: #{conv2d_pallas.1} parent=5 // pred_check_branch
      %143 = sbr.rel (%p141) target = $region24
    $region23: #{conv2d_pallas.1} parent=5 // pred_region
      // Predicated region
      $region25: #{conv2d_pallas.1} parent=23 // pred_check
        %p144 = pneg %p85
      $region26: #{conv2d_pallas.1} parent=23 // pred_check_branch
        %146 = sbr.rel (%p144) target = $region28
      $region27: #{conv2d_pallas.1} parent=23 // pred_region
        %p147 = scmp.lt.s32.totalorder %s16, 1
        %s148 = scalar_select %p147, %s16, 1
        %p149 = scmp.lt.s32.totalorder %s17, 0
        %s150 = scalar_select %p149, %s17, 0
        %s151 = smul.addr %s148, 4
        %s152 = sadd.s32 %s150, %s151
        %s153 = smul.addr %s152, 4
        %s154 = scalar_lea.vmem %s2, %s153
      $region28: #{conv2d_pallas.1} parent=23 // pred_fallthru
        _
    $region24: #{conv2d_pallas.1} parent=5 // pred_fallthru
      _
    %p155 = scmp.le.s32.totalorder 1, %s9
    %p156 = scmp.lt.s32.totalorder %s9, 3
    %p157 = pnand %p155, %p156
    %p158 = pneg %p157
    // Predicated region
    $region29: #{conv2d_pallas.1} parent=5 // pred_check
      _
    $region30: #{conv2d_pallas.1} parent=5 // pred_check_branch
      %160 = sbr.rel (%p157) target = $region32
    $region31: #{conv2d_pallas.1} parent=5 // pred_region
      %s161 = ssub.s32 %s9, 1
      %p162 = pneg %p42
      %p163 = pneg %p39
      %p164 = pneg %p63
      %p165 = pneg %p60
      %p166 = scmp.lt.s32.totalorder %s18, 1
      %s167 = scalar_select %p166, %s18, 1
      %p168 = scmp.lt.s32.totalorder %s19, 0
      %s169 = scalar_select %p168, %s19, 0
      %s170 = smul.addr %s167, 4
      %s171 = sadd.s32 %s169, %s170
      %s172 = smul.addr %s171, 4
      %s173 = scalar_lea.vmem %s2, %s172
      %p174 = pneg %p91
      %p175 = pneg %p88
      %p176 = pneg %p119
      %p177 = pneg %p116
      %p178 = scmp.lt.s32.totalorder %s18, 1
      %s179 = scalar_select %p178, %s18, 1
      %p180 = scmp.lt.s32.totalorder %s19, 0
      %s181 = scalar_select %p180, %s19, 0
      %s182 = smul.addr %s179, 8
      %s183 = sadd.s32 %s181, %s182
      %s184 = smul.addr %s183, 8
      %s185 = scalar_lea.vmem %s3, %s184
      %p186 = scmp.lt.s32.totalorder %s18, 1
      %s187 = scalar_select %p186, %s18, 1
      %p188 = scmp.lt.s32.totalorder %s19, 0
      %s189 = scalar_select %p188, %s19, 0
      %s190 = smul.addr %s187, 4
      %s191 = sadd.s32 %s189, %s190
      %s192 = smul.addr %s191, 4
      %s193 = scalar_lea.vmem %s2, %s192
      %p194 = scmp.lt.s32.totalorder %s18, 1
      %s195 = scalar_select %p194, %s18, 1
      %p196 = scmp.lt.s32.totalorder %s19, 0
      %s197 = scalar_select %p196, %s19, 0
      %s198 = smul.addr %s195, 8
      %s199 = sadd.s32 %s197, %s198
      %s200 = smul.addr %s199, 8
      %s201 = scalar_lea.vmem %s3, %s200
      %v203 = vld [vmem:[%s0] sm:$0xf]
      %v204 = vld [vmem:[%s0 + $0x4] sm:$0xf]
      %v205 = vld [vmem:[%s0 + $0x8] sm:$0xf]
      %v206 = vld [vmem:[%s0 + $0xc] sm:$0xf]
      %v207 = vld [vmem:[%s0 + $0x10] sm:$0xf]
      %v208 = vld [vmem:[%s0 + $0x14] sm:$0xf]
      %v209 = vld [vmem:[%s0 + $0x18] sm:$0xf]
      %v210 = vld [vmem:[%s0 + $0x1c] sm:$0xf]
      %v211 = vld [vmem:[%s193] sm:$0xf]
      %v212 = vld [vmem:[%s193 + $0x4] sm:$0xf]
      %v213 = vld [vmem:[%s193 + $0x8] sm:$0xf]
      %v214 = vld [vmem:[%s193 + $0xc] sm:$0x3]
      %v215 = vld [vmem:[%s1] sm:$0xff]
      %v216 = vld [vmem:[%s1 + $0x8] sm:$0xff]
      %v217 = vld [vmem:[%s1 + $0x10] sm:$0xff]
      %v218 = vld [vmem:[%s1 + $0x18] sm:$0xff]
      %v219 = vld [vmem:[%s1 + $0x20] sm:$0xff]
      %v220 = vld [vmem:[%s1 + $0x28] sm:$0xff]
      %v221 = vld [vmem:[%s1 + $0x30] sm:$0xff]
      %v222 = vld [vmem:[%s1 + $0x38] sm:$0xff]
      %224 = vset.pattern.permute.xlu0 0
      %225 = vperm.xlu0 %224, %v215
      %v226 = vpop.permute.xlu0 %225
      %229 = vset.pattern.permute.xlu0 0
      %230 = vperm.xlu0 %229, %v216
      %v231 = vpop.permute.xlu0 %230
      %234 = vset.pattern.permute.xlu0 0
      %235 = vperm.xlu0 %234, %v217
      %v236 = vpop.permute.xlu0 %235
      %239 = vset.pattern.permute.xlu0 0
      %240 = vperm.xlu0 %239, %v218
      %v241 = vpop.permute.xlu0 %240
      %244 = vset.pattern.permute.xlu0 0
      %245 = vperm.xlu0 %244, %v219
      %v246 = vpop.permute.xlu0 %245
      %249 = vset.pattern.permute.xlu0 0
      %250 = vperm.xlu0 %249, %v220
      %v251 = vpop.permute.xlu0 %250
      %254 = vset.pattern.permute.xlu0 0
      %255 = vperm.xlu0 %254, %v221
      %v256 = vpop.permute.xlu0 %255
      %259 = vset.pattern.permute.xlu0 0
      %260 = vperm.xlu0 %259, %v222
      %v261 = vpop.permute.xlu0 %260
      %v271 = vunpack.c.l.b16 %v203
      %v272 = vunpack.c.l.b16 %v204
      %v273 = vunpack.c.l.b16 %v205
      %v274 = vunpack.c.l.b16 %v206
      %v275 = vunpack.c.l.b16 %v207
      %v276 = vunpack.c.l.b16 %v208
      %v277 = vunpack.c.l.b16 %v209
      %v278 = vunpack.c.l.b16 %v210
      %v279 = vpack.c.b16 %v272, %v271
      %v280 = vpack.c.b16 %v274, %v273
      %v281 = vpack.c.b16 %v276, %v275
      %v282 = vpack.c.b16 %v278, %v277
      %v287 = vunpack.c.l.b16 %v211
      %v288 = vunpack.c.l.b16 %v212
      %v289 = vunpack.c.l.b16 %v213
      %v290 = vunpack.c.l.b16 %v214
      %v291 = vpack.c.b16 %v288, %v287
      %v292 = vpack.c.b16 %v290, %v289
      %vm294 = vcmask 220160
      %v296 = vsel %vm294, %v279, 0
      %v299 = vsel %vm294, %v280, 0
      %v302 = vsel %vm294, %v281, 0
      %v305 = vsel %vm294, %v282, 0
      %vm307 = vcmask 1044480
      %vm308 = vcmask 1045504
      %v309 = vsel %vm307, 4294967295, 65535
      %v310 = vsel %vm308, %v309, 0
      %v312 = vand.u32 %v292, %v310
      %314 = vmatpush.bf16.msra.mxu0 0
      %315 = vmatpush.bf16.msra.mxu0 0
      %316 = vmatpush.bf16.msra.mxu0 0
      %317 = vmatpush.bf16.msra.mxu0 0
      %318 = vmatpush.bf16.msra.mxu0 0
      %319 = vmatpush.bf16.msra.mxu0 0
      %320 = vmatpush.bf16.msra.mxu0 %v312
      %321 = vmatpush.bf16.msra.mxu0 %v291
      %322 = vmatmul.bf16.gmra.mxu0 %v296
      %v323 = vpop.f32.mrf.mxu0
      %v324 = vadd.f32 %v226, %v323
      %v325 = vpop.f32.mrf.mxu0
      %v326 = vadd.f32 %v231, %v325
      %327 = vmatmul.bf16.gmra.mxu0 %v299
      %v328 = vpop.f32.mrf.mxu0
      %v329 = vadd.f32 %v236, %v328
      %v330 = vpop.f32.mrf.mxu0
      %v331 = vadd.f32 %v241, %v330
      %332 = vmatmul.bf16.gmra.mxu0 %v302
      %v333 = vpop.f32.mrf.mxu0
      %v334 = vadd.f32 %v246, %v333
      %v335 = vpop.f32.mrf.mxu0
      %v336 = vadd.f32 %v251, %v335
      %337 = vmatmul.bf16.gmra.mxu0 %v305
      %v338 = vpop.f32.mrf.mxu0
      %v339 = vadd.f32 %v256, %v338
      %v340 = vpop.f32.mrf.mxu0
      %v341 = vadd.f32 %v261, %v340
      %342 = vdwg.mxu0
      %vm343 = vcmask 523264
      %344 = vst.msk [vmem:[%s201] sm:$0xff] %vm343, %v324
      %345 = vst.msk [vmem:[%s201 + $0x8] sm:$0xff] %vm343, %v326
      %346 = vst.msk [vmem:[%s201 + $0x10] sm:$0xff] %vm343, %v329
      %347 = vst.msk [vmem:[%s201 + $0x18] sm:$0xff] %vm343, %v331
      %348 = vst.msk [vmem:[%s201 + $0x20] sm:$0xff] %vm343, %v334
      %349 = vst.msk [vmem:[%s201 + $0x28] sm:$0xff] %vm343, %v336
      %350 = vst.msk [vmem:[%s201 + $0x30] sm:$0xff] %vm343, %v339
      %351 = vst.msk [vmem:[%s201 + $0x38] sm:$0xff] %vm343, %v341
      %p352 = scmp.lt.s32.totalorder %s18, 1
      %s353 = scalar_select %p352, %s18, 1
      %p354 = scmp.lt.s32.totalorder %s19, 0
      %s355 = scalar_select %p354, %s19, 0
      %s356 = smul.addr %s353, 8
      %s357 = sadd.s32 %s355, %s356
      %s358 = smul.addr %s357, 8
      %s359 = scalar_lea.vmem %s3, %s358
      // Predicated region
      $region33: #{conv2d_pallas.1} parent=31 // pred_check
        %p360 = pneg %p116
      $region34: #{conv2d_pallas.1} parent=31 // pred_check_branch
        %362 = sbr.rel (%p360) target = $region36
      $region35: #{conv2d_pallas.1} parent=31 // pred_region
        _
      $region36: #{conv2d_pallas.1} parent=31 // pred_fallthru
        _
    $region32: #{conv2d_pallas.1} parent=5 // pred_fallthru
      _
    %p363 = scmp.le.s32.totalorder 2, %s9
    // Predicated region
    $region37: #{conv2d_pallas.1} parent=5 // pred_check
      %p364 = pneg %p363
    $region38: #{conv2d_pallas.1} parent=5 // pred_check_branch
      %366 = sbr.rel (%p364) target = $region40
    $region39: #{conv2d_pallas.1} parent=5 // pred_region
      %s367 = ssub.s32 %s9, 2
      // Predicated region
      $region41: #{conv2d_pallas.1} parent=39 // pred_check
        %p368 = pneg %p122
      $region42: #{conv2d_pallas.1} parent=39 // pred_check_branch
        %370 = sbr.rel (%p368) target = $region44
      $region43: #{conv2d_pallas.1} parent=39 // pred_region
        %p371 = scmp.lt.s32.totalorder %s20, 1
        %s372 = scalar_select %p371, %s20, 1
        %p373 = scmp.lt.s32.totalorder %s21, 0
        %s374 = scalar_select %p373, %s21, 0
        %s375 = smul.addr %s372, 8
        %s376 = sadd.s32 %s374, %s375
        %s377 = smul.addr %s376, 8
        %s378 = scalar_lea.vmem %s3, %s377
      $region44: #{conv2d_pallas.1} parent=39 // pred_fallthru
        _
    $region40: #{conv2d_pallas.1} parent=5 // pred_fallthru
      _
  $region6: #{conv2d_pallas.1} parent=0 // loop_footer
    %s13 = sadd.s32 1, %s9
  $region7: #{conv2d_pallas.1} parent=0 // loop_footer_branch
    %8 = sbr.rel target = $region3
  $region8: #{conv2d_pallas.1} parent=0 // loop_exit
    _

</llo_original>
